<compile_context>
chip_gen: v5e
topology: v5e:2x2
jax: 0.10.0
libtpu: 0.0.40
codegen_flags: <defaults>
</compile_context>

<pallas_src>
import jax
import jax.numpy as jnp
from jax.experimental import pallas as pl
from jax.experimental.pallas import tpu as pltpu


# ----------------------------------------------------------------------------
# Kernel bodies. Per grid step: encoder chunk (B, TS, H), query (B, H)
# -> scores (B, TS). All accumulation in f32.
# ----------------------------------------------------------------------------
def _dot_kernel(enc_ref, q_ref, out_ref):
    enc = enc_ref[...].astype(jnp.float32)                 # (B, TS, H) upcast per tile
    q = q_ref[...].astype(jnp.float32)                     # (B, H)
    out_ref[...] = jnp.sum(enc * q[:, None, :], axis=-1)   # VPU mul + XLU lane reduce


def _concat_kernel(enc_ref, hidproj_ref, wt_ref, wvec_ref, out_ref):
    b, ts, h = enc_ref.shape
    # One batched MXU call over the whole chunk: bf16 operands, f32 accumulate.
    x = enc_ref[...].astype(jnp.bfloat16).reshape(b * ts, h)
    proj = jnp.dot(x, wt_ref[...], preferred_element_type=jnp.float32)  # (B*TS, H)
    # tanh((enc + hid) @ W^T) == tanh(enc @ W^T + hid @ W^T); hid @ W^T hoisted.
    proj = proj.reshape(b, ts, h) + hidproj_ref[...][:, None, :]
    proj = jnp.tanh(proj)
    wv = wvec_ref[...].astype(jnp.float32)                 # (1, H)
    out_ref[...] = jnp.sum(proj * wv[None, :, :], axis=-1)  # (B, TS)


# ----------------------------------------------------------------------------
# Tile picking: largest multiple-of-128 chunk that divides the padded length,
# fits a conservative per-tile byte budget (double-buffered by the pipeline,
# safe under the 32 MiB default scoped VMEM on v5e/v6e/v7x), and leaves >= 2
# sequence chunks so the grid can pipeline and megacore-shard.
# ----------------------------------------------------------------------------
def _pick_ts(s_pad, batch, hidden, itemsize, *, tile_budget_bytes=12 << 20):
    for cand in (1024, 512, 256, 128):
        if s_pad % cand:
            continue
        if batch * cand * hidden * itemsize > tile_budget_bytes:
            continue
        if s_pad // cand >= 2 or s_pad == cand == 128:
            return cand
    return 128


# ----------------------------------------------------------------------------
# Wrapper
# ----------------------------------------------------------------------------
def attention_forward(decoder_hidden, encoder_outputs, *, method="dot",
                      fc_weight=None, concat_weight=None):
    """
    decoder_hidden  : (B, H) or (B, 1, H)
    encoder_outputs : (B, S, H)  -- any float dtype; NOT upcast in the wrapper
    returns         : attention scores (B, S) float32
    """
    encoder_outputs = jnp.asarray(encoder_outputs)         # keep native dtype
    B, S, H = encoder_outputs.shape
    hid = jnp.asarray(decoder_hidden, jnp.float32).reshape(B, H)

    # Pad sequence to a multiple of 128 for lane-dense output slabs.
    s_pad = max(128, ((S + 127) // 128) * 128)
    if s_pad != S:
        encoder_outputs = jnp.pad(
            encoder_outputs, ((0, 0), (0, s_pad - S), (0, 0)))

    itemsize = encoder_outputs.dtype.itemsize
    ts = _pick_ts(s_pad, B, H, itemsize)
    grid = (s_pad // ts,)

    enc_spec = pl.BlockSpec((B, ts, H), lambda s: (0, s, 0))
    vec_spec = pl.BlockSpec((B, H), lambda s: (0, 0))
    out_spec = pl.BlockSpec((B, ts), lambda s: (0, s))
    out_shape = jax.ShapeDtypeStruct((B, s_pad), jnp.float32)

    enc_bytes = B * s_pad * H * itemsize
    out_bytes = B * s_pad * 4

    if method in ("dot", "general"):
        if method == "general":
            # q is chunk-invariant: hoist the (B,H)x(H,H) projection out of
            # the grid loop entirely (tiny XLA matmul in the wrapper).
            q = hid @ jnp.asarray(fc_weight, jnp.float32).T
        else:
            q = hid
        kernel = _dot_kernel
        in_arrays = [encoder_outputs, q]
        in_specs = [enc_spec, vec_spec]
        cost = pl.CostEstimate(
            flops=int(2 * B * s_pad * H),
            transcendentals=0,
            bytes_accessed=int(enc_bytes + B * H * 4 + out_bytes),
        )
    elif method == "concat":
        fc_w = jnp.asarray(fc_weight, jnp.float32)
        hid_proj = hid @ fc_w.T                               # (B, H) f32, hoisted
        wt_bf16 = fc_w.T.astype(jnp.bfloat16)                 # (H, H) MXU operand
        wv = jnp.asarray(concat_weight, jnp.float32).reshape(1, H)
        kernel = _concat_kernel
        in_arrays = [encoder_outputs, hid_proj, wt_bf16, wv]
        in_specs = [enc_spec, vec_spec,
                    pl.BlockSpec((H, H), lambda s: (0, 0)),
                    pl.BlockSpec((1, H), lambda s: (0, 0))]
        cost = pl.CostEstimate(
            flops=int(2 * B * s_pad * H * H + 4 * B * s_pad * H),
            transcendentals=int(B * s_pad * H),
            bytes_accessed=int(enc_bytes + H * H * 2 + B * H * 4 + H * 4
                               + out_bytes),
        )
    else:
        raise ValueError(f"unknown attention method: {method}")

    out = pl.pallas_call(
        kernel,
        out_shape=out_shape,
        grid_spec=pltpu.PrefetchScalarGridSpec(
            num_scalar_prefetch=0,
            grid=grid,
            in_specs=in_specs,
            out_specs=out_spec,
        ),
        compiler_params=pltpu.CompilerParams(
            # score chunks along S are independent -> megacore-shardable
            dimension_semantics=("parallel",),
        ),
        cost_estimate=cost,
    )(*in_arrays)

    return out[:, :S] if s_pad != S else out


# ----------------------------------------------------------------------------
# Pure-JAX reference (mirrors the PyTorch forward, batch-generalized, f32)
# ----------------------------------------------------------------------------
def attention_reference(decoder_hidden, encoder_outputs, *, method="dot",
                        fc_weight=None, concat_weight=None):
    encoder_outputs = jnp.asarray(encoder_outputs, jnp.float32)
    B, S, H = encoder_outputs.shape
    hid = jnp.asarray(decoder_hidden, jnp.float32).reshape(B, H)
    if method == "dot":
        return jnp.einsum("bsh,bh->bs", encoder_outputs, hid)
    if method == "general":
        q = hid @ jnp.asarray(fc_weight, jnp.float32).T
        return jnp.einsum("bsh,bh->bs", encoder_outputs, q)
    if method == "concat":
        fc_w = jnp.asarray(fc_weight, jnp.float32)
        x = jnp.tanh((encoder_outputs + hid[:, None, :]) @ fc_w.T)
        return jnp.einsum("bsh,h->bs", x,
                          jnp.asarray(concat_weight, jnp.float32).reshape(H))
    raise ValueError(method)


# ----------------------------------------------------------------------------
if __name__ == "__main__":
    key = jax.random.PRNGKey(0)
    k_h, k_e, k_w, k_v = jax.random.split(key, 4)

    # hidden_size = 128; B=2 sequences of S=256 encoder steps.
    B, S, H = 2, 256, 128

    decoder_hidden = jax.random.normal(k_h, (B, 1, H), jnp.float32)
    encoder_outputs = jax.random.normal(k_e, (B, S, H), jnp.float32)

    bound = 1.0 / jnp.sqrt(jnp.float32(H))
    fc_weight = jax.random.uniform(k_w, (H, H), jnp.float32, -bound, bound)
    concat_weight = jax.random.uniform(k_v, (1, H), jnp.float32, -bound, bound)

    # --- method='dot' (module default), f32 input ---
    out_dot = attention_forward(decoder_hidden, encoder_outputs, method="dot")
    ref_dot = attention_reference(decoder_hidden, encoder_outputs, method="dot")
    assert out_dot.shape == (B, S)
    assert jnp.allclose(out_dot, ref_dot, atol=2e-3, rtol=2e-3)

    # Literal torch formula at batch=1 (the torch 'dot' path only supports
    # batch 1 via decoder_hidden.view(1, -1, 1)):
    out_b1 = attention_forward(decoder_hidden[:1], encoder_outputs[:1],
                               method="dot")
    lit_b1 = jnp.matmul(encoder_outputs[:1],
                        decoder_hidden[:1].reshape(1, -1, 1))[..., 0]
    assert jnp.allclose(out_b1, lit_b1, atol=2e-3, rtol=2e-3)

    # --- method='dot', bf16 encoder outputs (no wrapper upcast) ---
    enc_bf16 = encoder_outputs.astype(jnp.bfloat16)
    out_bf = attention_forward(decoder_hidden, enc_bf16, method="dot")
    ref_bf = attention_reference(decoder_hidden, enc_bf16, method="dot")
    assert jnp.allclose(out_bf, ref_bf, atol=2e-3, rtol=2e-3)

    # --- method='general' ---
    out_gen = attention_forward(decoder_hidden, encoder_outputs,
                                method="general", fc_weight=fc_weight)
    ref_gen = attention_reference(decoder_hidden, encoder_outputs,
                                  method="general", fc_weight=fc_weight)
    assert jnp.allclose(out_gen, ref_gen, atol=2e-3, rtol=2e-3)

    # --- method='concat' (bf16 MXU matmul inside, f32 accumulation) ---
    out_cat = attention_forward(decoder_hidden, encoder_outputs,
                                method="concat", fc_weight=fc_weight,
                                concat_weight=concat_weight)
    ref_cat = attention_reference(decoder_hidden, encoder_outputs,
                                  method="concat", fc_weight=fc_weight,
                                  concat_weight=concat_weight)
    assert jnp.allclose(out_cat, ref_cat, atol=2e-2, rtol=2e-2)

    # --- non-multiple-of-128 sequence length exercises the padding path ---
    S2 = 200
    enc_ragged = jax.random.normal(k_e, (B, S2, H), jnp.float32)
    out_pad = attention_forward(decoder_hidden, enc_ragged, method="dot")
    ref_pad = attention_reference(decoder_hidden, enc_ragged, method="dot")
    assert out_pad.shape == (B, S2)
    assert jnp.allclose(out_pad, ref_pad, atol=2e-3, rtol=2e-3)

    jax.block_until_ready((out_dot, out_b1, out_bf, out_gen, out_cat, out_pad))
    print("KERNEL_OK")
</pallas_src>

<mosaic_0001>
module attributes {stable_mosaic.version = 11 : i64} {
  func.func @_dot_kernel(%arg0: i32, %arg1: memref<2x128x128xf32, #tpu.memory_space<vmem>>, %arg2: memref<2x128xf32, #tpu.memory_space<vmem>>, %arg3: memref<2x128xf32, #tpu.memory_space<vmem>>) attributes {dimension_semantics = [#tpu.dimension_semantics<parallel>], iteration_bounds = array<i64: 2>, scalar_prefetch = 0 : i64, scratch_operands = 0 : i64, tpu.core_type = #tpu.core_type<tc>, window_params = [{transform_indices = @transform_0, window_bounds = array<i64: 2, 128, 128>}, {pipeline_mode = #tpu.pipeline_mode<synchronous>, transform_indices = @transform_1, window_bounds = array<i64: 2, 128>}, {transform_indices = @transform_2, window_bounds = array<i64: 2, 128>}]} {
    %c0 = arith.constant 0 : index
    %c0_0 = arith.constant 0 : index
    %c0_1 = arith.constant 0 : index
    %0 = vector.load %arg1[%c0, %c0_0, %c0_1] : memref<2x128x128xf32, #tpu.memory_space<vmem>>, vector<2x128x128xf32>
    %c0_2 = arith.constant 0 : index
    %c0_3 = arith.constant 0 : index
    %1 = vector.load %arg2[%c0_2, %c0_3] : memref<2x128xf32, #tpu.memory_space<vmem>>, vector<2x128xf32>
    %2 = vector.shape_cast %1 : vector<2x128xf32> to vector<2x1x128xf32>
    %3 = vector.broadcast %2 : vector<2x1x128xf32> to vector<2x128x128xf32>
    %4 = arith.mulf %0, %3 : vector<2x128x128xf32>
    %cst = arith.constant dense<0.000000e+00> : vector<2x128xf32>
    %5 = vector.multi_reduction <add>, %4, %cst [2] : vector<2x128x128xf32> to vector<2x128xf32>
    %c0_4 = arith.constant 0 : index
    %c0_5 = arith.constant 0 : index
    %6 = vector.load %arg3[%c0_4, %c0_5] : memref<2x128xf32, #tpu.memory_space<vmem>>, vector<2x128xf32>
    tpu.vector_store %arg3[%c0_4, %c0_5], %5 {strides = array<i32>} : memref<2x128xf32, #tpu.memory_space<vmem>>, vector<2x128xf32>,
    return
  }
  func.func @transform_0(%arg0: i32) -> (i32, i32, i32) {
    %c0_i32 = arith.constant 0 : i32
    %c0_i32_0 = arith.constant 0 : i32
    %c0_i32_1 = arith.constant 0 : i32
    return %c0_i32, %arg0, %c0_i32_0 : i32, i32, i32
  }
  func.func @transform_1(%arg0: i32) -> (i32, i32) {
    %c0_i32 = arith.constant 0 : i32
    %c0_i32_0 = arith.constant 0 : i32
    %c0_i32_1 = arith.constant 0 : i32
    return %c0_i32, %c0_i32_0 : i32, i32
  }
  func.func @transform_2(%arg0: i32) -> (i32, i32) {
    %c0_i32 = arith.constant 0 : i32
    %c0_i32_0 = arith.constant 0 : i32
    return %c0_i32, %arg0 : i32, i32
  }
}

</mosaic_0001>

<llo_original>
// kernel: tpu_custom_call.1
$region0: #{tpu_custom_call.1}
  #allocation0 [shape = 'u32[]', space=smem, size = 0x4, offset = 0x4, fixed_abs, tag = 'smem constant byte address 0x4 - core index']
  #allocation1 [shape = 'u32[72,128]{1,0:T(1,128)}', space=vmem, size = 0x9000, scoped, tag = 'internal scratch']
  #allocation8 [shape = 's32[]', space=sflag, size = 0x4, offset = 0, fixed_abs, tag = 'sflag constant byte address 0x0 - dummy sync flag']
  %s0 = inlined_call_operand.hbm [shape: f32[2,256,128], index: 0, kind: input, shape index: {}]
  %s1 = inlined_call_operand.hbm [shape: f32[2,128], index: 1, kind: input, shape index: {}]
  %s2 = inlined_call_operand.hbm [shape: f32[2,256], index: 2, kind: output, shape index: {}]
  %s3 = sld [smem:[#allocation0]]
  $region49: #{tpu_custom_call.1} parent=0
    _
  %s5 = ssub.s32 1, %s3
  %s6 = scalar_select 0, %s5, %s3
  $region1: #{tpu_custom_call.1} parent=0
    #allocation2 [shape = 'u8[262144]{0}', space=vmem, size = 0x40000, scoped, tag = 'input window, operand 0']
    #allocation3 [shape = 's32[2]{0}', space=sflag, size = 0x8, scoped, tag = 'scoped memory for tpu_custom_call.1']
    #allocation4 [shape = 's32[2]{0}', space=sflag, size = 0x8, scoped, tag = 'scoped memory for tpu_custom_call.1']
    #allocation5 [shape = 'u8[1024]{0}', space=vmem, size = 0x400, scoped, tag = 'input window, operand 1, single buffered']
    #allocation6 [shape = 's32[1]{0}', space=sflag, size = 0x4, scoped, tag = 'scoped memory for tpu_custom_call.1']
    #allocation7 [shape = 'u8[2048]{0}', space=vmem, size = 0x800, scoped, tag = 'output window, operand 0']
    %7 = vsyncpa [#allocation3], 0
    %s8 = scalar_lea.sflag [#allocation3], 1
    %9 = vsyncpa %s8, 0
    %10 = vsyncpa [#allocation6], 0
    %11 = vsyncpa [#allocation4], 0
    %s12 = scalar_lea.sflag [#allocation4], 1
    %13 = vsyncpa %s12, 0
    loop: start=0, step=1, limit=4
    $region2: #{tpu_custom_call.1} parent=1 // loop_pre_header
      _
    $region3: #{tpu_custom_call.1} parent=1 // loop_header
      %s15 = sphi 0, %s19
      %p16 = scmp.ge.s32.totalorder %s15, 4
      %s25 = sphi 0, %s27
      %s28 = sphi 0, %s25
      %s29 = sphi 0, %s28
      %s45 = sphi 0, %s29
      %s49 = sphi 0, %s49
      %s51 = sphi 0, %s49
      %s52 = sphi 0, %s51
      %s66 = sphi 0, %s52
      %s72 = sphi 0, %s74
      %s75 = sphi 0, %s72
      %s76 = sphi 0, %s75
      %s92 = sphi 0, %s76
    $region4: #{tpu_custom_call.1} parent=1 // loop_header_branch
      %18 = sbr.rel (%p16) target = $region8
    $region5: #{tpu_custom_call.1} parent=1 // loop_body
      %s20 = ssub.s32 %s15, 1
      %s21 = ssub.s32 %s15, 2
      %s22 = sadd.s32 %s15, 1
      %s23 = ssub.s32 %s15, %s22
      %p24 = scmp.eq.s32.totalorder %s23, 0
      %s26 = sadd.s32 %s25, 1
      %s27 = scalar_select %p24, %s25, %s26
      %p30 = pneg %p24
      %p31 = scmp.eq.s32.totalorder %s15, 1
      %p32 = por %p30, %p31
      %p33 = scmp.ne.s32.totalorder %s25, %s28
      %p34 = scmp.eq.s32.totalorder %s15, 0
      %p35 = por %p33, %p34
      %p36 = scmp.ne.s32.totalorder %s25, %s28
      %p37 = scmp.eq.s32.totalorder %s20, 1
      %p38 = por %p36, %p37
      %p39 = scmp.ne.s32.totalorder %s28, %s29
      %p40 = scmp.eq.s32.totalorder %s20, 0
      %p41 = por %p39, %p40
      %p42 = scmp.ne.s32.totalorder %s28, %s29
      %p43 = scmp.eq.s32.totalorder %s21, 1
      %p44 = por %p42, %p43
      %p46 = scmp.ne.s32.totalorder %s29, %s45
      %p47 = scmp.eq.s32.totalorder %s21, 0
      %p48 = por %p46, %p47
      %s50 = sadd.s32 %s49, 1
      %p53 = scmp.eq.s32.totalorder %s15, 1
      %p54 = scmp.ne.s32.totalorder %s49, %s51
      %p55 = scmp.eq.s32.totalorder %s15, 0
      %p56 = por %p54, %p55
      %p57 = scmp.ne.s32.totalorder %s49, %s51
      %p58 = scmp.eq.s32.totalorder %s20, 1
      %p59 = por %p57, %p58
      %p60 = scmp.ne.s32.totalorder %s51, %s52
      %p61 = scmp.eq.s32.totalorder %s20, 0
      %p62 = por %p60, %p61
      %p63 = scmp.ne.s32.totalorder %s51, %s52
      %p64 = scmp.eq.s32.totalorder %s21, 1
      %p65 = por %p63, %p64
      %p67 = scmp.ne.s32.totalorder %s52, %s66
      %p68 = scmp.eq.s32.totalorder %s21, 0
      %p69 = por %p67, %p68
      %s70 = ssub.s32 %s15, %s22
      %p71 = scmp.eq.s32.totalorder %s70, 0
      %s73 = sadd.s32 %s72, 1
      %s74 = scalar_select %p71, %s72, %s73
      %p77 = pneg %p71
      %p78 = scmp.eq.s32.totalorder %s15, 1
      %p79 = por %p77, %p78
      %p80 = scmp.ne.s32.totalorder %s72, %s75
      %p81 = scmp.eq.s32.totalorder %s15, 0
      %p82 = por %p80, %p81
      %p83 = scmp.ne.s32.totalorder %s72, %s75
      %p84 = scmp.eq.s32.totalorder %s20, 1
      %p85 = por %p83, %p84
      %p86 = scmp.ne.s32.totalorder %s75, %s76
      %p87 = scmp.eq.s32.totalorder %s20, 0
      %p88 = por %p86, %p87
      %p89 = scmp.ne.s32.totalorder %s75, %s76
      %p90 = scmp.eq.s32.totalorder %s21, 1
      %p91 = por %p89, %p90
      %p93 = scmp.ne.s32.totalorder %s76, %s92
      %p94 = scmp.eq.s32.totalorder %s21, 0
      %p95 = por %p93, %p94
      %p96 = scmp.le.s32.totalorder 1, %s15
      %p97 = scmp.lt.s32.totalorder %s15, 3
      %p98 = pnand %p96, %p97
      %p99 = pneg %p98
      // Predicated region
      $region9: #{tpu_custom_call.1} parent=5 // pred_check
        _
      $region10: #{tpu_custom_call.1} parent=5 // pred_check_branch
        %101 = sbr.rel (%p98) target = $region12
      $region11: #{tpu_custom_call.1} parent=5 // pred_region
        %s102 = ssub.s32 %s15, 1
        // Predicated region
        $region13: #{tpu_custom_call.1} parent=11 // pred_check
          %p103 = pneg %p62
        $region14: #{tpu_custom_call.1} parent=11 // pred_check_branch
          %105 = sbr.rel (%p103) target = $region16
        $region15: #{tpu_custom_call.1} parent=11 // pred_region
          %107 = vsyncadd [#allocation6], 0
          %s109 = sshll.u32 %s1, 4
          %s110 = int_to_ptr.hbm [resolvable:$true] %s109
          %s111 = sshll.u32 [#allocation5], 4
          %s112 = int_to_ptr.vmem [resolvable:$true] %s111
          %114 = dma.hbm_to_vmem [thread:$0]  %s110, 32, %s112, [#allocation6]
        $region16: #{tpu_custom_call.1} parent=11 // pred_fallthru
          _
      $region12: #{tpu_custom_call.1} parent=5 // pred_fallthru
        _
      %p115 = scmp.lt.s32.totalorder %s15, 2
      // Predicated region
      $region17: #{tpu_custom_call.1} parent=5 // pred_check
        %p116 = pneg %p115
      $region18: #{tpu_custom_call.1} parent=5 // pred_check_branch
        %118 = sbr.rel (%p116) target = $region20
      $region19: #{tpu_custom_call.1} parent=5 // pred_region
        // Predicated region
        $region21: #{tpu_custom_call.1} parent=19 // pred_check
          %p119 = pneg %p35
        $region22: #{tpu_custom_call.1} parent=19 // pred_check_branch
          %121 = sbr.rel (%p119) target = $region24
        $region23: #{tpu_custom_call.1} parent=19 // pred_region
          #allocation9 [shape = 'u32[6]{0}', space=smem, size = 0x18, scoped, tag = 'DMA stride descriptor']
          %s122 = sand.u32 %s25, 1
          %s123 = scalar_lea.sflag [#allocation3], %s122
          %s124 = sand.u32 %s25, 1
          %s125 = smul.addr %s124, 256
          %s126 = scalar_lea.vmem [#allocation2], %s125
          %s127 = smul.u32 16, %s15
          %129 = vsyncadd %s123, 0
          %s130 = smul.addr %s127, 8
          %s131 = scalar_lea.hbm %s0, %s130
          %s133 = sshll.u32 1, 14
          %s134 = sxor.u32 4294967295, %s133
          %s136 = sld [smem:[#allocation0]]
          %s137 = sadd.s32 2, %s136
          %s139 = sshll.u32 7, 26
          %s140 = sxor.u32 4294967295, %s139
          %s141 = sand.u32 0, %s140
          %s142 = sshll.u32 %s137, 26
          %s143 = sor.u32 %s141, %s142
          %s144 = sshll.u32 %s131, 4
          %s145 = int_to_ptr.hbm [resolvable:$true] %s144
          %s146 = sshll.u32 %s126, 4
          %s147 = int_to_ptr.vmem [resolvable:$true] %s146
          %153 = sst [smem:[#allocation9]] 4096
          %s154 = scalar_lea.smem [#allocation9], 1
          %155 = sst [smem:[%s154]] 2048
          %s156 = scalar_lea.smem [#allocation9], 2
          %157 = sst [smem:[%s156]] 16
          %s158 = scalar_lea.smem [#allocation9], 3
          %159 = sst [smem:[%s158]] 128
          %s160 = scalar_lea.smem [#allocation9], 4
          %161 = sst [smem:[%s160]] 128
          %s162 = scalar_lea.smem [#allocation9], 5
          %163 = sst [smem:[%s162]] 8
          %165 = dma.general %s145, 4096, %s147, %s123, [#allocation8], [#allocation9], %s143, 0
        $region24: #{tpu_custom_call.1} parent=19 // pred_fallthru
          _
      $region20: #{tpu_custom_call.1} parent=5 // pred_fallthru
        _
      %p166 = scmp.le.s32.totalorder 1, %s15
      %p167 = scmp.lt.s32.totalorder %s15, 3
      %p168 = pnand %p166, %p167
      %p169 = pneg %p168
      // Predicated region
      $region25: #{tpu_custom_call.1} parent=5 // pred_check
        _
      $region26: #{tpu_custom_call.1} parent=5 // pred_check_branch
        %171 = sbr.rel (%p168) target = $region28
      $region27: #{tpu_custom_call.1} parent=5 // pred_region
        %s172 = ssub.s32 %s15, 1
        %s173 = sand.u32 %s28, 1
        %s174 = scalar_lea.sflag [#allocation3], %s173
        %s175 = sand.u32 %s28, 1
        %s176 = smul.addr %s175, 256
        %s177 = scalar_lea.vmem [#allocation2], %s176
        // Predicated region
        $region29: #{tpu_custom_call.1} parent=27 // pred_check
          %p178 = pneg %p41
        $region30: #{tpu_custom_call.1} parent=27 // pred_check_branch
          %180 = sbr.rel (%p178) target = $region32
        $region31: #{tpu_custom_call.1} parent=27 // pred_region
          %182 = dma.done %s174, 4096
        $region32: #{tpu_custom_call.1} parent=27 // pred_fallthru
          _
        // Predicated region
        $region33: #{tpu_custom_call.1} parent=27 // pred_check
          %p183 = pneg %p62
        $region34: #{tpu_custom_call.1} parent=27 // pred_check_branch
          %185 = sbr.rel (%p183) target = $region36
        $region35: #{tpu_custom_call.1} parent=27 // pred_region
          %187 = dma.done [#allocation6], 32
        $region36: #{tpu_custom_call.1} parent=27 // pred_fallthru
          _
        %s188 = sand.u32 %s28, 1
        %s189 = scalar_lea.sflag [#allocation3], %s188
        %s190 = sand.u32 %s28, 1
        %s191 = smul.addr %s190, 256
        %s192 = scalar_lea.vmem [#allocation2], %s191
        %p193 = pneg %p41
        %p194 = pneg %p38
        %p195 = pneg %p62
        %p196 = pneg %p59
        %p197 = pneg %p88
        %p198 = pneg %p85
        %s199 = sand.u32 %s75, 1
        %s200 = scalar_lea.sflag [#allocation4], %s199
        %s201 = sand.u32 %s75, 1
        %s202 = smul.addr %s201, 2
        %s203 = scalar_lea.vmem [#allocation7], %s202
        %s204 = smul.u32 16, %s20
        %v205 = vld [vmem:[%s177] sm:$0xff]
        %v206 = vld [vmem:[%s177 + $0x8] sm:$0xff]
        %v207 = vld [vmem:[%s177 + $0x10] sm:$0xff]
        %v208 = vld [vmem:[%s177 + $0x18] sm:$0xff]
        %v209 = vld [vmem:[%s177 + $0x20] sm:$0xff]
        %v210 = vld [vmem:[%s177 + $0x28] sm:$0xff]
        %v211 = vld [vmem:[%s177 + $0x30] sm:$0xff]
        %v212 = vld [vmem:[%s177 + $0x38] sm:$0xff]
        %v213 = vld [vmem:[%s177 + $0x40] sm:$0xff]
        %v214 = vld [vmem:[%s177 + $0x48] sm:$0xff]
        %v215 = vld [vmem:[%s177 + $0x50] sm:$0xff]
        %v216 = vld [vmem:[%s177 + $0x58] sm:$0xff]
        %v217 = vld [vmem:[%s177 + $0x60] sm:$0xff]
        %v218 = vld [vmem:[%s177 + $0x68] sm:$0xff]
        %v219 = vld [vmem:[%s177 + $0x70] sm:$0xff]
        %v220 = vld [vmem:[%s177 + $0x78] sm:$0xff]
        %v221 = vld [vmem:[%s177 + $0x80] sm:$0xff]
        %v222 = vld [vmem:[%s177 + $0x88] sm:$0xff]
        %v223 = vld [vmem:[%s177 + $0x90] sm:$0xff]
        %v224 = vld [vmem:[%s177 + $0x98] sm:$0xff]
        %v225 = vld [vmem:[%s177 + $0xa0] sm:$0xff]
        %v226 = vld [vmem:[%s177 + $0xa8] sm:$0xff]
        %v227 = vld [vmem:[%s177 + $0xb0] sm:$0xff]
        %v228 = vld [vmem:[%s177 + $0xb8] sm:$0xff]
        %v229 = vld [vmem:[%s177 + $0xc0] sm:$0xff]
        %v230 = vld [vmem:[%s177 + $0xc8] sm:$0xff]
        %v231 = vld [vmem:[%s177 + $0xd0] sm:$0xff]
        %v232 = vld [vmem:[%s177 + $0xd8] sm:$0xff]
        %v233 = vld [vmem:[%s177 + $0xe0] sm:$0xff]
        %v234 = vld [vmem:[%s177 + $0xe8] sm:$0xff]
        %v235 = vld [vmem:[%s177 + $0xf0] sm:$0xff]
        %v236 = vld [vmem:[%s177 + $0xf8] sm:$0xff]
        %v237 = vld [vmem:[#allocation5] sm:$0x3]
        %v239 = vrot.slane %v237, 1
        %v240 = vperm.slane %v237, 0
        %v241 = vperm.slane %v239, 0
        %v244 = vmul.f32 %v205, %v240
        %v245 = vmul.f32 %v206, %v240
        %v246 = vmul.f32 %v207, %v240
        %v247 = vmul.f32 %v208, %v240
        %v248 = vmul.f32 %v209, %v240
        %v249 = vmul.f32 %v210, %v240
        %v250 = vmul.f32 %v211, %v240
        %v251 = vmul.f32 %v212, %v240
        %v252 = vmul.f32 %v213, %v240
        %v253 = vmul.f32 %v214, %v240
        %v254 = vmul.f32 %v215, %v240
        %v255 = vmul.f32 %v216, %v240
        %v256 = vmul.f32 %v217, %v240
        %v257 = vmul.f32 %v218, %v240
        %v258 = vmul.f32 %v219, %v240
        %v259 = vmul.f32 %v220, %v240
        %v260 = vmul.f32 %v221, %v241
        %v261 = vmul.f32 %v222, %v241
        %v262 = vmul.f32 %v223, %v241
        %v263 = vmul.f32 %v224, %v241
        %v264 = vmul.f32 %v225, %v241
        %v265 = vmul.f32 %v226, %v241
        %v266 = vmul.f32 %v227, %v241
        %v267 = vmul.f32 %v228, %v241
        %v268 = vmul.f32 %v229, %v241
        %v269 = vmul.f32 %v230, %v241
        %v270 = vmul.f32 %v231, %v241
        %v271 = vmul.f32 %v232, %v241
        %v272 = vmul.f32 %v233, %v241
        %v273 = vmul.f32 %v234, %v241
        %v274 = vmul.f32 %v235, %v241
        %v275 = vmul.f32 %v236, %v241
        %276 = vadd.xlane.f32.xlu0 %v244
        %v277 = vpop.xlane.xlu0 %276
        %278 = vadd.xlane.f32.xlu0 %v245
        %v279 = vpop.xlane.xlu0 %278
        %280 = vadd.xlane.f32.xlu0 %v246
        %v281 = vpop.xlane.xlu0 %280
        %282 = vadd.xlane.f32.xlu0 %v247
        %v283 = vpop.xlane.xlu0 %282
        %284 = vadd.xlane.f32.xlu0 %v248
        %v285 = vpop.xlane.xlu0 %284
        %286 = vadd.xlane.f32.xlu0 %v249
        %v287 = vpop.xlane.xlu0 %286
        %288 = vadd.xlane.f32.xlu0 %v250
        %v289 = vpop.xlane.xlu0 %288
        %290 = vadd.xlane.f32.xlu0 %v251
        %v291 = vpop.xlane.xlu0 %290
        %292 = vadd.xlane.f32.xlu0 %v252
        %v293 = vpop.xlane.xlu0 %292
        %294 = vadd.xlane.f32.xlu0 %v253
        %v295 = vpop.xlane.xlu0 %294
        %296 = vadd.xlane.f32.xlu0 %v254
        %v297 = vpop.xlane.xlu0 %296
        %298 = vadd.xlane.f32.xlu0 %v255
        %v299 = vpop.xlane.xlu0 %298
        %300 = vadd.xlane.f32.xlu0 %v256
        %v301 = vpop.xlane.xlu0 %300
        %302 = vadd.xlane.f32.xlu0 %v257
        %v303 = vpop.xlane.xlu0 %302
        %304 = vadd.xlane.f32.xlu0 %v258
        %v305 = vpop.xlane.xlu0 %304
        %306 = vadd.xlane.f32.xlu0 %v259
        %v307 = vpop.xlane.xlu0 %306
        %308 = vadd.xlane.f32.xlu0 %v260
        %v309 = vpop.xlane.xlu0 %308
        %310 = vadd.xlane.f32.xlu0 %v261
        %v311 = vpop.xlane.xlu0 %310
        %312 = vadd.xlane.f32.xlu0 %v262
        %v313 = vpop.xlane.xlu0 %312
        %314 = vadd.xlane.f32.xlu0 %v263
        %v315 = vpop.xlane.xlu0 %314
        %316 = vadd.xlane.f32.xlu0 %v264
        %v317 = vpop.xlane.xlu0 %316
        %318 = vadd.xlane.f32.xlu0 %v265
        %v319 = vpop.xlane.xlu0 %318
        %320 = vadd.xlane.f32.xlu0 %v266
        %v321 = vpop.xlane.xlu0 %320
        %322 = vadd.xlane.f32.xlu0 %v267
        %v323 = vpop.xlane.xlu0 %322
        %324 = vadd.xlane.f32.xlu0 %v268
        %v325 = vpop.xlane.xlu0 %324
        %326 = vadd.xlane.f32.xlu0 %v269
        %v327 = vpop.xlane.xlu0 %326
        %328 = vadd.xlane.f32.xlu0 %v270
        %v329 = vpop.xlane.xlu0 %328
        %330 = vadd.xlane.f32.xlu0 %v271
        %v331 = vpop.xlane.xlu0 %330
        %332 = vadd.xlane.f32.xlu0 %v272
        %v333 = vpop.xlane.xlu0 %332
        %334 = vadd.xlane.f32.xlu0 %v273
        %v335 = vpop.xlane.xlu0 %334
        %336 = vadd.xlane.f32.xlu0 %v274
        %v337 = vpop.xlane.xlu0 %336
        %338 = vadd.xlane.f32.xlu0 %v275
        %v339 = vpop.xlane.xlu0 %338
        %v372 = vlaneseq
        %v373 = vand.u32 %v372, 127
        %v374 = vperm.slane %v277, %v373
        %v375 = vadd.s32 %v373, 4294967288
        %v376 = vperm.slane %v279, %v375
        %vm377 = vcmask 130112
        %v378 = vsel %vm377, %v376, %v374
        %v379 = vadd.s32 %v373, 4294967280
        %v380 = vperm.slane %v281, %v379
        %vm381 = vcmask 195712
        %v382 = vsel %vm381, %v380, %v378
        %v383 = vadd.s32 %v373, 4294967272
        %v384 = vperm.slane %v283, %v383
        %vm385 = vcmask 261312
        %v386 = vsel %vm385, %v384, %v382
        %v387 = vadd.s32 %v373, 4294967264
        %v388 = vperm.slane %v285, %v387
        %vm389 = vcmask 326912
        %v390 = vsel %vm389, %v388, %v386
        %v391 = vadd.s32 %v373, 4294967256
        %v392 = vperm.slane %v287, %v391
        %vm393 = vcmask 392512
        %v394 = vsel %vm393, %v392, %v390
        %v395 = vadd.s32 %v373, 4294967248
        %v396 = vperm.slane %v289, %v395
        %vm397 = vcmask 458112
        %v398 = vsel %vm397, %v396, %v394
        %v399 = vadd.s32 %v373, 4294967240
        %v400 = vperm.slane %v291, %v399
        %vm401 = vcmask 523712
        %v402 = vsel %vm401, %v400, %v398
        %v403 = vadd.s32 %v373, 4294967232
        %v404 = vperm.slane %v293, %v403
        %vm405 = vcmask 589312
        %v406 = vsel %vm405, %v404, %v402
        %v407 = vadd.s32 %v373, 4294967224
        %v408 = vperm.slane %v295, %v407
        %vm409 = vcmask 654912
        %v410 = vsel %vm409, %v408, %v406
        %v411 = vadd.s32 %v373, 4294967216
        %v412 = vperm.slane %v297, %v411
        %vm413 = vcmask 720512
        %v414 = vsel %vm413, %v412, %v410
        %v415 = vadd.s32 %v373, 4294967208
        %v416 = vperm.slane %v299, %v415
        %vm417 = vcmask 786112
        %v418 = vsel %vm417, %v416, %v414
        %v419 = vadd.s32 %v373, 4294967200
        %v420 = vperm.slane %v301, %v419
        %vm421 = vcmask 851712
        %v422 = vsel %vm421, %v420, %v418
        %v423 = vadd.s32 %v373, 4294967192
        %v424 = vperm.slane %v303, %v423
        %vm425 = vcmask 917312
        %v426 = vsel %vm425, %v424, %v422
        %v427 = vadd.s32 %v373, 4294967184
        %v428 = vperm.slane %v305, %v427
        %vm429 = vcmask 982912
        %v430 = vsel %vm429, %v428, %v426
        %v431 = vadd.s32 %v373, 4294967176
        %v432 = vperm.slane %v307, %v431
        %vm433 = vcmask 1048512
        %v434 = vsel %vm433, %v432, %v430
        %v435 = vperm.slane %v309, %v373
        %v436 = vperm.slane %v311, %v375
        %v437 = vsel %vm377, %v436, %v435
        %v438 = vperm.slane %v313, %v379
        %v439 = vsel %vm381, %v438, %v437
        %v440 = vperm.slane %v315, %v383
        %v441 = vsel %vm385, %v440, %v439
        %v442 = vperm.slane %v317, %v387
        %v443 = vsel %vm389, %v442, %v441
        %v444 = vperm.slane %v319, %v391
        %v445 = vsel %vm393, %v444, %v443
        %v446 = vperm.slane %v321, %v395
        %v447 = vsel %vm397, %v446, %v445
        %v448 = vperm.slane %v323, %v399
        %v449 = vsel %vm401, %v448, %v447
        %v450 = vperm.slane %v325, %v403
        %v451 = vsel %vm405, %v450, %v449
        %v452 = vperm.slane %v327, %v407
        %v453 = vsel %vm409, %v452, %v451
        %v454 = vperm.slane %v329, %v411
        %v455 = vsel %vm413, %v454, %v453
        %v456 = vperm.slane %v331, %v415
        %v457 = vsel %vm417, %v456, %v455
        %v458 = vperm.slane %v333, %v419
        %v459 = vsel %vm421, %v458, %v457
        %v460 = vperm.slane %v335, %v423
        %v461 = vsel %vm425, %v460, %v459
        %v462 = vperm.slane %v337, %v427
        %v463 = vsel %vm429, %v462, %v461
        %v464 = vperm.slane %v339, %v431
        %v465 = vsel %vm433, %v464, %v463
        %vm466 = vcmask 1041409
        %v467 = vsel %vm466, %v465, %v434
        %469 = vst [vmem:[%s203] sm:$0x3] %v467
        %s470 = sand.u32 %s75, 1
        %s471 = scalar_lea.sflag [#allocation4], %s470
        %s472 = sand.u32 %s75, 1
        %s473 = smul.addr %s472, 2
        %s474 = scalar_lea.vmem [#allocation7], %s473
        // Predicated region
        $region37: #{tpu_custom_call.1} parent=27 // pred_check
          %p475 = pneg %p85
        $region38: #{tpu_custom_call.1} parent=27 // pred_check_branch
          %477 = sbr.rel (%p475) target = $region40
        $region39: #{tpu_custom_call.1} parent=27 // pred_region
          %479 = vsyncadd %s471, 0
          %s480 = smul.addr %s20, 2
          %s481 = scalar_lea.hbm %s2, %s480
          %s483 = sshll.u32 %s474, 4
          %s484 = int_to_ptr.vmem [resolvable:$true] %s483
          %s485 = sshll.u32 %s481, 4
          %s486 = int_to_ptr.hbm [resolvable:$true] %s485
          %488 = dma.vmem_to_hbm [thread:$0]  %s484, 32, %s486, %s471
        $region40: #{tpu_custom_call.1} parent=27 // pred_fallthru
          _
      $region28: #{tpu_custom_call.1} parent=5 // pred_fallthru
        _
      %p489 = scmp.le.s32.totalorder 2, %s15
      // Predicated region
      $region41: #{tpu_custom_call.1} parent=5 // pred_check
        %p490 = pneg %p489
      $region42: #{tpu_custom_call.1} parent=5 // pred_check_branch
        %492 = sbr.rel (%p490) target = $region44
      $region43: #{tpu_custom_call.1} parent=5 // pred_region
        %s493 = ssub.s32 %s15, 2
        // Predicated region
        $region45: #{tpu_custom_call.1} parent=43 // pred_check
          %p494 = pneg %p91
        $region46: #{tpu_custom_call.1} parent=43 // pred_check_branch
          %496 = sbr.rel (%p494) target = $region48
        $region47: #{tpu_custom_call.1} parent=43 // pred_region
          %s497 = sand.u32 %s76, 1
          %s498 = scalar_lea.sflag [#allocation4], %s497
          %s499 = sand.u32 %s76, 1
          %s500 = smul.addr %s499, 2
          %s501 = scalar_lea.vmem [#allocation7], %s500
          %503 = dma.done %s498, 32
        $region48: #{tpu_custom_call.1} parent=43 // pred_fallthru
          _
      $region44: #{tpu_custom_call.1} parent=5 // pred_fallthru
        _
    $region6: #{tpu_custom_call.1} parent=1 // loop_footer
      %s19 = sadd.s32 1, %s15
    $region7: #{tpu_custom_call.1} parent=1 // loop_footer_branch
      %14 = sbr.rel target = $region3
    $region8: #{tpu_custom_call.1} parent=1 // loop_exit
      _
    %504 = vsyncpa [#allocation3], 1
    %s505 = scalar_lea.sflag [#allocation3], 1
    %506 = vsyncpa %s505, 1
    %507 = vsyncpa [#allocation6], 1
    %508 = vsyncpa [#allocation4], 1
    %s509 = scalar_lea.sflag [#allocation4], 1
    %510 = vsyncpa %s509, 1

</llo_original>
